<compile_context>
chip_gen: v5e
topology: v5e:2x2
jax: 0.10.0
libtpu: 0.0.40
codegen_flags: <defaults>
</compile_context>

<pallas_src>
import functools

import jax
import jax.numpy as jnp
from jax import lax
from jax.experimental import pallas as pl
from jax.experimental.pallas import tpu as pltpu

ALPHA = 0.25
GAMMA = 2.0


def _round_up(x, m):
    return (x + m - 1) // m * m


def _focal_pow(omp, gamma):
    """(1 - pt) ** gamma; small-integer gamma -> plain VPU multiplies (no EUP pow)."""
    if float(gamma) == int(gamma) and 0 <= int(gamma) <= 4:
        g = int(gamma)
        if g == 0:
            return jnp.ones_like(omp)
        r = omp
        for _ in range(g - 1):
            r = r * omp
        return r
    return jnp.power(omp, jnp.float32(gamma))


def _focal_loss_kernel(logits_ref, targets_ref, out_ref, *, hw, t_hw, alpha, gamma,
                       accumulate):
    j = pl.program_id(1)

    if accumulate:
        @pl.when(j == 0)
        def _():
            out_ref[...] = jnp.zeros_like(out_ref)

    x = logits_ref[...].astype(jnp.float32)     # (C, t_hw): classes on sublanes, pixels on lanes
    t = targets_ref[...]                        # (1, t_hw) int32

    # stable log-sum-exp over the class (sublane) axis
    m = jnp.max(x, axis=0, keepdims=True)                                   # (1, t_hw)
    lse = m + jnp.log(jnp.sum(jnp.exp(x - m), axis=0, keepdims=True))       # (1, t_hw)

    # gather the target logit via select + sublane reduce (no dynamic gather on TPU)
    cls = lax.broadcasted_iota(jnp.int32, x.shape, 0)                       # (C, t_hw)
    tgt_logit = jnp.sum(jnp.where(cls == t, x, 0.0), axis=0, keepdims=True)

    # clamp guards the tiny-negative-ce -> pt > 1 hazard
    ce = jnp.maximum(lse - tgt_logit, 0.0)                                  # (1, t_hw)
    pt = jnp.exp(-ce)
    focal = (alpha * ce) * _focal_pow(1.0 - pt, gamma)

    if accumulate:
        if hw % t_hw != 0:
            # mask out padded pixels beyond the true H*W extent (last tile only)
            lane = lax.broadcasted_iota(jnp.int32, (1, t_hw), 1)
            focal = jnp.where(j * t_hw + lane < hw, focal, 0.0)
        # per-lane accumulation; single cross-lane reduce happens in the wrapper
        out_ref[...] += focal
    else:
        # per-pixel loss map; padded lanes are sliced off in the wrapper
        out_ref[...] = focal


def focal_loss(inputs, targets, *, alpha=ALPHA, gamma=GAMMA, reduction="mean",
               tile_bytes=2 * 1024 * 1024):
    """inputs: (N, C, H, W) float, targets: (N, H, W) int.

    Matches PyTorch FocalLoss(alpha, gamma) for reduction in {'mean', 'sum', 'none'}.
    'mean'/'sum' return a scalar; 'none' returns the (N, H, W) per-pixel focal loss.
    """
    N, C, H, W = inputs.shape
    HW = H * W
    M = N * HW

    # Free reshapes of the NCHW layout -- no HBM transpose, no dtype upcast in HBM.
    logits = inputs.reshape(N, C, HW)
    tgt = targets.reshape(N, 1, HW).astype(jnp.int32)

    # Lane-dense pixel tile sized from a per-buffer byte budget so double-buffered
    # logits + targets (+ output) stay inside default scoped VMEM on v5e/v6e/v7x.
    bytes_per_pixel = C * logits.dtype.itemsize + 4          # logits + int32 target
    t_hw = max(128, (tile_bytes // bytes_per_pixel) // 128 * 128)
    t_hw = min(t_hw, _round_up(HW, 128))

    hw_pad = _round_up(HW, t_hw)
    if hw_pad != HW:
        logits = jnp.pad(logits, ((0, 0), (0, 0), (0, hw_pad - HW)))
        tgt = jnp.pad(tgt, ((0, 0), (0, 0), (0, hw_pad - HW)))

    grid = (N, hw_pad // t_hw)
    accumulate = reduction in ("mean", "sum")
    kernel = functools.partial(_focal_loss_kernel, hw=HW, t_hw=t_hw,
                               alpha=alpha, gamma=gamma, accumulate=accumulate)

    if accumulate:
        # per-batch lane accumulator, resident across the reduction axis j
        out_shape = jax.ShapeDtypeStruct((N, 1, t_hw), jnp.float32)
        out_spec = pl.BlockSpec((None, 1, t_hw), lambda i, j: (i, 0, 0))
    else:
        # full per-pixel loss map, lane-dense
        out_shape = jax.ShapeDtypeStruct((N, 1, hw_pad), jnp.float32)
        out_spec = pl.BlockSpec((None, 1, t_hw), lambda i, j: (i, 0, j))

    out = pl.pallas_call(
        kernel,
        out_shape=out_shape,
        grid_spec=pltpu.PrefetchScalarGridSpec(
            num_scalar_prefetch=0,
            grid=grid,
            in_specs=[
                # classes on sublanes (C == full dim), pixels on lanes (t_hw % 128 == 0)
                pl.BlockSpec((None, C, t_hw), lambda i, j: (i, 0, j)),
                pl.BlockSpec((None, 1, t_hw), lambda i, j: (i, 0, j)),
            ],
            out_specs=out_spec,
        ),
        compiler_params=pltpu.CompilerParams(
            dimension_semantics=("parallel", "arbitrary"),
        ),
    )(logits, tgt)

    if reduction == "mean":
        return jnp.sum(out) / jnp.float32(M)
    elif reduction == "sum":
        return jnp.sum(out)
    else:  # 'none' -> per-pixel loss map (same shape as CrossEntropyLoss(reduction='none'))
        return out[:, 0, :HW].reshape(N, H, W)


def _focal_loss_reference(inputs, targets, alpha=ALPHA, gamma=GAMMA, reduction="mean"):
    """Pure-JAX reference matching PyTorch semantics."""
    N, C, H, W = inputs.shape
    logits = jnp.transpose(inputs, (0, 2, 3, 1)).reshape(-1, C).astype(jnp.float32)
    tgt = targets.reshape(-1).astype(jnp.int32)
    lse = jax.scipy.special.logsumexp(logits, axis=-1)
    tgt_logit = jnp.take_along_axis(logits, tgt[:, None], axis=-1)[:, 0]
    ce = lse - tgt_logit
    pt = jnp.exp(-ce)
    focal = alpha * (1.0 - pt) ** gamma * ce
    if reduction == "mean":
        return jnp.mean(focal)
    elif reduction == "sum":
        return jnp.sum(focal)
    return focal.reshape(N, H, W)


if __name__ == "__main__":
    key = jax.random.PRNGKey(0)
    k1, k2 = jax.random.split(key)

    N, C, H, W = 2, 4, 16, 16
    inputs = jax.random.normal(k1, (N, C, H, W), dtype=jnp.float32)
    targets = jax.random.randint(k2, (N, H, W), 0, C, dtype=jnp.int32)

    # reduction='mean' (module default)
    out = focal_loss(inputs, targets)
    jax.block_until_ready(out)
    ref = _focal_loss_reference(inputs, targets)
    assert jnp.allclose(out, ref, rtol=1e-5, atol=1e-6), (out, ref)

    # reduction='none' (per-pixel map)
    out_map = focal_loss(inputs, targets, reduction="none")
    jax.block_until_ready(out_map)
    ref_map = _focal_loss_reference(inputs, targets, reduction="none")
    assert jnp.allclose(out_map, ref_map, rtol=1e-5, atol=1e-6)

    print("KERNEL_OK")
</pallas_src>

<mosaic_0001>
module attributes {stable_mosaic.version = 11 : i64} {
  func.func @_focal_loss_kernel(%arg0: i32, %arg1: i32, %arg2: memref<1x4x256xf32, #tpu.memory_space<vmem>>, %arg3: memref<1x1x256xi32, #tpu.memory_space<vmem>>, %arg4: memref<1x1x256xf32, #tpu.memory_space<vmem>>) attributes {dimension_semantics = [#tpu.dimension_semantics<parallel>, #tpu.dimension_semantics<arbitrary>], iteration_bounds = array<i64: 2, 1>, scalar_prefetch = 0 : i64, scratch_operands = 0 : i64, tpu.core_type = #tpu.core_type<tc>, window_params = [{transform_indices = @transform_0, window_bounds = array<i64: 1, 4, 256>}, {transform_indices = @transform_1, window_bounds = array<i64: 1, 1, 256>}, {transform_indices = @transform_2, window_bounds = array<i64: 1, 1, 256>}]} {
    %c0_i32 = arith.constant 0 : i32
    %0 = arith.cmpi eq, %arg1, %c0_i32 : i32
    %1 = arith.extui %0 : i1 to i32
    %c0_i32_0 = arith.constant 0 : i32
    %2 = arith.cmpi ne, %1, %c0_i32_0 : i32
    scf.if %2 {
      %cst_19 = arith.constant 0.000000e+00 : f32
      %41 = vector.broadcast %cst_19 : f32 to vector<1x256xf32>
      %c0_20 = arith.constant 0 : index
      %c0_21 = arith.constant 0 : index
      %c0_22 = arith.constant 0 : index
      %42 = vector.load %arg4[%c0_20, %c0_21, %c0_22] : memref<1x1x256xf32, #tpu.memory_space<vmem>>, vector<1x1x256xf32>
      %43 = vector.shape_cast %42 : vector<1x1x256xf32> to vector<1x256xf32>
      %44 = vector.shape_cast %41 : vector<1x256xf32> to vector<1x1x256xf32>
      tpu.vector_store %arg4[%c0_20, %c0_21, %c0_22], %44 {strides = array<i32>} : memref<1x1x256xf32, #tpu.memory_space<vmem>>, vector<1x1x256xf32>,
    } else {
    }
    %c0 = arith.constant 0 : index
    %c0_1 = arith.constant 0 : index
    %c0_2 = arith.constant 0 : index
    %3 = vector.load %arg2[%c0, %c0_1, %c0_2] : memref<1x4x256xf32, #tpu.memory_space<vmem>>, vector<1x4x256xf32>
    %4 = vector.shape_cast %3 : vector<1x4x256xf32> to vector<4x256xf32>
    %c0_3 = arith.constant 0 : index
    %c0_4 = arith.constant 0 : index
    %c0_5 = arith.constant 0 : index
    %5 = vector.load %arg3[%c0_3, %c0_4, %c0_5] : memref<1x1x256xi32, #tpu.memory_space<vmem>>, vector<1x1x256xi32>
    %6 = vector.shape_cast %5 : vector<1x1x256xi32> to vector<1x256xi32>
    %cst = arith.constant dense<0xFF800000> : vector<256xf32>
    %7 = vector.multi_reduction <maximumf>, %4, %cst [0] : vector<4x256xf32> to vector<256xf32>
    %8 = vector.shape_cast %7 : vector<256xf32> to vector<1x256xf32>
    %9 = vector.broadcast %8 : vector<1x256xf32> to vector<4x256xf32>
    %10 = arith.subf %4, %9 : vector<4x256xf32>
    %11 = math.exp %10 : vector<4x256xf32>
    %cst_6 = arith.constant dense<0.000000e+00> : vector<256xf32>
    %12 = vector.multi_reduction <add>, %11, %cst_6 [0] : vector<4x256xf32> to vector<256xf32>
    %13 = vector.shape_cast %12 : vector<256xf32> to vector<1x256xf32>
    %14 = math.log %13 : vector<1x256xf32>
    %15 = arith.addf %8, %14 : vector<1x256xf32>
    %16 = tpu.iota {dimensions = array<i32: 0>} : vector<4x256xi32>
    %17 = vector.broadcast %6 : vector<1x256xi32> to vector<4x256xi32>
    %18 = arith.cmpi eq, %16, %17 : vector<4x256xi32>
    %cst_7 = arith.constant 0.000000e+00 : f32
    %19 = vector.broadcast %cst_7 : f32 to vector<4x256xf32>
    %20 = arith.select %18, %4, %19 : vector<4x256xi1>, vector<4x256xf32>
    %cst_8 = arith.constant dense<0.000000e+00> : vector<256xf32>
    %21 = vector.multi_reduction <add>, %20, %cst_8 [0] : vector<4x256xf32> to vector<256xf32>
    %22 = vector.shape_cast %21 : vector<256xf32> to vector<1x256xf32>
    %23 = arith.subf %15, %22 : vector<1x256xf32>
    %cst_9 = arith.constant 0.000000e+00 : f32
    %24 = vector.broadcast %cst_9 : f32 to vector<1x256xf32>
    %25 = arith.maximumf %23, %24 : vector<1x256xf32>
    %cst_10 = arith.constant 0.000000e+00 : f32
    %26 = vector.broadcast %cst_10 : f32 to vector<1x256xf32>
    %27 = arith.subf %26, %25 : vector<1x256xf32>
    %28 = math.exp %27 : vector<1x256xf32>
    %cst_11 = arith.constant 2.500000e-01 : f32
    %29 = vector.broadcast %cst_11 : f32 to vector<1x256xf32>
    %30 = arith.mulf %29, %25 : vector<1x256xf32>
    %cst_12 = arith.constant 1.000000e+00 : f32
    %31 = vector.broadcast %cst_12 : f32 to vector<1x256xf32>
    %32 = arith.subf %31, %28 : vector<1x256xf32>
    %33 = arith.mulf %32, %32 : vector<1x256xf32>
    %34 = arith.mulf %30, %33 : vector<1x256xf32>
    %c0_13 = arith.constant 0 : index
    %c0_14 = arith.constant 0 : index
    %c0_15 = arith.constant 0 : index
    %35 = vector.load %arg4[%c0_13, %c0_14, %c0_15] : memref<1x1x256xf32, #tpu.memory_space<vmem>>, vector<1x1x256xf32>
    %36 = vector.shape_cast %35 : vector<1x1x256xf32> to vector<1x256xf32>
    %37 = arith.addf %36, %34 : vector<1x256xf32>
    %c0_16 = arith.constant 0 : index
    %c0_17 = arith.constant 0 : index
    %c0_18 = arith.constant 0 : index
    %38 = vector.load %arg4[%c0_16, %c0_17, %c0_18] : memref<1x1x256xf32, #tpu.memory_space<vmem>>, vector<1x1x256xf32>
    %39 = vector.shape_cast %38 : vector<1x1x256xf32> to vector<1x256xf32>
    %40 = vector.shape_cast %37 : vector<1x256xf32> to vector<1x1x256xf32>
    tpu.vector_store %arg4[%c0_16, %c0_17, %c0_18], %40 {strides = array<i32>} : memref<1x1x256xf32, #tpu.memory_space<vmem>>, vector<1x1x256xf32>,
    return
  }
  func.func @transform_0(%arg0: i32, %arg1: i32) -> (i32, i32, i32) {
    %c0_i32 = arith.constant 0 : i32
    %c0_i32_0 = arith.constant 0 : i32
    return %arg0, %c0_i32, %arg1 : i32, i32, i32
  }
  func.func @transform_1(%arg0: i32, %arg1: i32) -> (i32, i32, i32) {
    %c0_i32 = arith.constant 0 : i32
    %c0_i32_0 = arith.constant 0 : i32
    return %arg0, %c0_i32, %arg1 : i32, i32, i32
  }
  func.func @transform_2(%arg0: i32, %arg1: i32) -> (i32, i32, i32) {
    %c0_i32 = arith.constant 0 : i32
    %c0_i32_0 = arith.constant 0 : i32
    %c0_i32_1 = arith.constant 0 : i32
    return %arg0, %c0_i32, %c0_i32_0 : i32, i32, i32
  }
}

</mosaic_0001>

<llo_original>
// kernel: tpu_custom_call.1
$region0: #{tpu_custom_call.1}
  #allocation0 [shape = 'u32[]', space=smem, size = 0x4, offset = 0x4, fixed_abs, tag = 'smem constant byte address 0x4 - core index']
  #allocation1 [shape = 'u32[72,128]{1,0:T(1,128)}', space=vmem, size = 0x9000, scoped, tag = 'internal scratch']
  %s0 = inlined_call_operand.hbm [shape: f32[2,4,256], index: 0, kind: input, shape index: {}]
  %s1 = inlined_call_operand.hbm [shape: s32[2,1,256], index: 1, kind: input, shape index: {}]
  %s2 = inlined_call_operand.hbm [shape: f32[2,1,256], index: 2, kind: output, shape index: {}]
  %s3 = sld [smem:[#allocation0]]
  $region53: #{tpu_custom_call.1} parent=0
    _
  %s5 = ssub.s32 1, %s3
  %s6 = scalar_select 0, %s5, %s3
  $region1: #{tpu_custom_call.1} parent=0
    #allocation2 [shape = 'u8[8192]{0}', space=vmem, size = 0x2000, scoped, tag = 'input window, operand 0']
    #allocation3 [shape = 's32[2]{0}', space=sflag, size = 0x8, scoped, tag = 'scoped memory for tpu_custom_call.1']
    #allocation4 [shape = 's32[2]{0}', space=sflag, size = 0x8, scoped, tag = 'scoped memory for tpu_custom_call.1']
    #allocation5 [shape = 'u8[2048]{0}', space=vmem, size = 0x800, scoped, tag = 'input window, operand 1']
    #allocation6 [shape = 's32[2]{0}', space=sflag, size = 0x8, scoped, tag = 'scoped memory for tpu_custom_call.1']
    #allocation7 [shape = 'u8[2048]{0}', space=vmem, size = 0x800, scoped, tag = 'output window, operand 0']
    %7 = vsyncpa [#allocation3], 0
    %s8 = scalar_lea.sflag [#allocation3], 1
    %9 = vsyncpa %s8, 0
    %10 = vsyncpa [#allocation6], 0
    %s11 = scalar_lea.sflag [#allocation6], 1
    %12 = vsyncpa %s11, 0
    %13 = vsyncpa [#allocation4], 0
    %s14 = scalar_lea.sflag [#allocation4], 1
    %15 = vsyncpa %s14, 0
    loop: start=0, step=1, limit=4
    $region2: #{tpu_custom_call.1} parent=1 // loop_pre_header
      _
    $region3: #{tpu_custom_call.1} parent=1 // loop_header
      %s17 = sphi 0, %s21
      %p18 = scmp.ge.s32.totalorder %s17, 4
      %s24 = sphi 0, %s36
      %s25 = sphi 0, %s32
      %s26 = sphi 0, %s24
      %s27 = sphi 0, %s25
      %s28 = sphi 0, %s26
      %s29 = sphi 0, %s27
      %s41 = sphi 0, %s43
      %s44 = sphi 0, %s41
      %s45 = sphi 0, %s44
      %s61 = sphi 0, %s45
      %s69 = sphi 0, %s71
      %s72 = sphi 0, %s69
      %s73 = sphi 0, %s72
      %s89 = sphi 0, %s73
      %s95 = sphi 0, %s97
      %s98 = sphi 0, %s95
      %s99 = sphi 0, %s98
      %s115 = sphi 0, %s99
    $region4: #{tpu_custom_call.1} parent=1 // loop_header_branch
      %20 = sbr.rel (%p18) target = $region8
    $region5: #{tpu_custom_call.1} parent=1 // loop_body
      %s22 = ssub.s32 %s17, 1
      %s23 = ssub.s32 %s17, 2
      %s30 = sadd.s32 1, %s25
      %p31 = scmp.ge.s32.totalorder %s30, 1
      %s32 = scalar_select %p31, 0, %s30
      %s33 = sadd.s32 1, %s24
      %s34 = scalar_select %p31, %s33, %s24
      %p35 = scmp.ge.s32.totalorder %s34, 2
      %s36 = scalar_select %p35, 0, %s34
      %s37 = ssub.s32 %s24, %s36
      %s38 = ssub.s32 %s25, %s32
      %s39 = sor.u32 %s37, %s38
      %p40 = scmp.eq.s32.totalorder %s39, 0
      %s42 = sadd.s32 %s41, 1
      %s43 = scalar_select %p40, %s41, %s42
      %p46 = pneg %p40
      %p47 = scmp.eq.s32.totalorder %s17, 1
      %p48 = por %p46, %p47
      %p49 = scmp.ne.s32.totalorder %s41, %s44
      %p50 = scmp.eq.s32.totalorder %s17, 0
      %p51 = por %p49, %p50
      %p52 = scmp.ne.s32.totalorder %s41, %s44
      %p53 = scmp.eq.s32.totalorder %s22, 1
      %p54 = por %p52, %p53
      %p55 = scmp.ne.s32.totalorder %s44, %s45
      %p56 = scmp.eq.s32.totalorder %s22, 0
      %p57 = por %p55, %p56
      %p58 = scmp.ne.s32.totalorder %s44, %s45
      %p59 = scmp.eq.s32.totalorder %s23, 1
      %p60 = por %p58, %p59
      %p62 = scmp.ne.s32.totalorder %s45, %s61
      %p63 = scmp.eq.s32.totalorder %s23, 0
      %p64 = por %p62, %p63
      %s65 = ssub.s32 %s24, %s36
      %s66 = ssub.s32 %s25, %s32
      %s67 = sor.u32 %s65, %s66
      %p68 = scmp.eq.s32.totalorder %s67, 0
      %s70 = sadd.s32 %s69, 1
      %s71 = scalar_select %p68, %s69, %s70
      %p74 = pneg %p68
      %p75 = scmp.eq.s32.totalorder %s17, 1
      %p76 = por %p74, %p75
      %p77 = scmp.ne.s32.totalorder %s69, %s72
      %p78 = scmp.eq.s32.totalorder %s17, 0
      %p79 = por %p77, %p78
      %p80 = scmp.ne.s32.totalorder %s69, %s72
      %p81 = scmp.eq.s32.totalorder %s22, 1
      %p82 = por %p80, %p81
      %p83 = scmp.ne.s32.totalorder %s72, %s73
      %p84 = scmp.eq.s32.totalorder %s22, 0
      %p85 = por %p83, %p84
      %p86 = scmp.ne.s32.totalorder %s72, %s73
      %p87 = scmp.eq.s32.totalorder %s23, 1
      %p88 = por %p86, %p87
      %p90 = scmp.ne.s32.totalorder %s73, %s89
      %p91 = scmp.eq.s32.totalorder %s23, 0
      %p92 = por %p90, %p91
      %s93 = ssub.s32 %s24, %s36
      %p94 = scmp.eq.s32.totalorder %s93, 0
      %s96 = sadd.s32 %s95, 1
      %s97 = scalar_select %p94, %s95, %s96
      %p100 = pneg %p94
      %p101 = scmp.eq.s32.totalorder %s17, 1
      %p102 = por %p100, %p101
      %p103 = scmp.ne.s32.totalorder %s95, %s98
      %p104 = scmp.eq.s32.totalorder %s17, 0
      %p105 = por %p103, %p104
      %p106 = scmp.ne.s32.totalorder %s95, %s98
      %p107 = scmp.eq.s32.totalorder %s22, 1
      %p108 = por %p106, %p107
      %p109 = scmp.ne.s32.totalorder %s98, %s99
      %p110 = scmp.eq.s32.totalorder %s22, 0
      %p111 = por %p109, %p110
      %p112 = scmp.ne.s32.totalorder %s98, %s99
      %p113 = scmp.eq.s32.totalorder %s23, 1
      %p114 = por %p112, %p113
      %p116 = scmp.ne.s32.totalorder %s99, %s115
      %p117 = scmp.eq.s32.totalorder %s23, 0
      %p118 = por %p116, %p117
      %p119 = scmp.le.s32.totalorder 1, %s17
      %p120 = scmp.lt.s32.totalorder %s17, 3
      %p121 = pnand %p119, %p120
      %p122 = pneg %p121
      // Predicated region
      $region9: #{tpu_custom_call.1} parent=5 // pred_check
        _
      $region10: #{tpu_custom_call.1} parent=5 // pred_check_branch
        %124 = sbr.rel (%p121) target = $region12
      $region11: #{tpu_custom_call.1} parent=5 // pred_region
        %s125 = ssub.s32 %s17, 1
      $region12: #{tpu_custom_call.1} parent=5 // pred_fallthru
        _
      %p126 = scmp.lt.s32.totalorder %s17, 2
      // Predicated region
      $region13: #{tpu_custom_call.1} parent=5 // pred_check
        %p127 = pneg %p126
      $region14: #{tpu_custom_call.1} parent=5 // pred_check_branch
        %129 = sbr.rel (%p127) target = $region16
      $region15: #{tpu_custom_call.1} parent=5 // pred_region
        // Predicated region
        $region17: #{tpu_custom_call.1} parent=15 // pred_check
          %p130 = pneg %p51
        $region18: #{tpu_custom_call.1} parent=15 // pred_check_branch
          %132 = sbr.rel (%p130) target = $region20
        $region19: #{tpu_custom_call.1} parent=15 // pred_region
          %s133 = sand.u32 %s41, 1
          %s134 = scalar_lea.sflag [#allocation3], %s133
          %s135 = sand.u32 %s41, 1
          %s136 = smul.addr %s135, 8
          %s137 = scalar_lea.vmem [#allocation2], %s136
          %s138 = smul.u32 2, %s25
          %140 = vsyncadd %s134, 0
          %s141 = smul.addr %s24, 2
          %s142 = sadd.s32 %s138, %s141
          %s143 = smul.addr %s142, 4
          %s144 = scalar_lea.hbm %s0, %s143
          %s146 = sshll.u32 %s144, 4
          %s147 = int_to_ptr.hbm [resolvable:$true] %s146
          %s148 = sshll.u32 %s137, 4
          %s149 = int_to_ptr.vmem [resolvable:$true] %s148
          %151 = dma.hbm_to_vmem [thread:$0]  %s147, 128, %s149, %s134
        $region20: #{tpu_custom_call.1} parent=15 // pred_fallthru
          _
        // Predicated region
        $region21: #{tpu_custom_call.1} parent=15 // pred_check
          %p152 = pneg %p79
        $region22: #{tpu_custom_call.1} parent=15 // pred_check_branch
          %154 = sbr.rel (%p152) target = $region24
        $region23: #{tpu_custom_call.1} parent=15 // pred_region
          %s155 = sand.u32 %s69, 1
          %s156 = scalar_lea.sflag [#allocation6], %s155
          %s157 = sand.u32 %s69, 1
          %s158 = smul.addr %s157, 2
          %s159 = scalar_lea.vmem [#allocation5], %s158
          %s160 = smul.u32 2, %s25
          %162 = vsyncadd %s156, 0
          %s163 = smul.addr %s24, 2
          %s164 = sadd.s32 %s160, %s163
          %s165 = scalar_lea.hbm %s1, %s164
          %s167 = sshll.u32 %s165, 4
          %s168 = int_to_ptr.hbm [resolvable:$true] %s167
          %s169 = sshll.u32 %s159, 4
          %s170 = int_to_ptr.vmem [resolvable:$true] %s169
          %172 = dma.hbm_to_vmem [thread:$0]  %s168, 32, %s170, %s156
        $region24: #{tpu_custom_call.1} parent=15 // pred_fallthru
          _
      $region16: #{tpu_custom_call.1} parent=5 // pred_fallthru
        _
      %p173 = scmp.le.s32.totalorder 1, %s17
      %p174 = scmp.lt.s32.totalorder %s17, 3
      %p175 = pnand %p173, %p174
      %p176 = pneg %p175
      // Predicated region
      $region25: #{tpu_custom_call.1} parent=5 // pred_check
        _
      $region26: #{tpu_custom_call.1} parent=5 // pred_check_branch
        %178 = sbr.rel (%p175) target = $region28
      $region27: #{tpu_custom_call.1} parent=5 // pred_region
        %s179 = ssub.s32 %s17, 1
        %s180 = sand.u32 %s44, 1
        %s181 = scalar_lea.sflag [#allocation3], %s180
        %s182 = sand.u32 %s44, 1
        %s183 = smul.addr %s182, 8
        %s184 = scalar_lea.vmem [#allocation2], %s183
        // Predicated region
        $region29: #{tpu_custom_call.1} parent=27 // pred_check
          %p185 = pneg %p57
        $region30: #{tpu_custom_call.1} parent=27 // pred_check_branch
          %187 = sbr.rel (%p185) target = $region32
        $region31: #{tpu_custom_call.1} parent=27 // pred_region
          %189 = dma.done %s181, 128
        $region32: #{tpu_custom_call.1} parent=27 // pred_fallthru
          _
        %s190 = sand.u32 %s72, 1
        %s191 = scalar_lea.sflag [#allocation6], %s190
        %s192 = sand.u32 %s72, 1
        %s193 = smul.addr %s192, 2
        %s194 = scalar_lea.vmem [#allocation5], %s193
        // Predicated region
        $region33: #{tpu_custom_call.1} parent=27 // pred_check
          %p195 = pneg %p85
        $region34: #{tpu_custom_call.1} parent=27 // pred_check_branch
          %197 = sbr.rel (%p195) target = $region36
        $region35: #{tpu_custom_call.1} parent=27 // pred_region
          %199 = dma.done %s191, 32
        $region36: #{tpu_custom_call.1} parent=27 // pred_fallthru
          _
        %s200 = sand.u32 %s44, 1
        %s201 = scalar_lea.sflag [#allocation3], %s200
        %s202 = sand.u32 %s44, 1
        %s203 = smul.addr %s202, 8
        %s204 = scalar_lea.vmem [#allocation2], %s203
        %p205 = pneg %p57
        %p206 = pneg %p54
        %s207 = sand.u32 %s72, 1
        %s208 = scalar_lea.sflag [#allocation6], %s207
        %s209 = sand.u32 %s72, 1
        %s210 = smul.addr %s209, 2
        %s211 = scalar_lea.vmem [#allocation5], %s210
        %p212 = pneg %p85
        %p213 = pneg %p82
        %p214 = pneg %p111
        %p215 = pneg %p108
        %s216 = sand.u32 %s98, 1
        %s217 = scalar_lea.sflag [#allocation4], %s216
        %s218 = sand.u32 %s98, 1
        %s219 = smul.addr %s218, 2
        %s220 = scalar_lea.vmem [#allocation7], %s219
        %s221 = smul.u32 2, %s27
        %s222 = smul.u32 2, %s27
        %p223 = scmp.eq.s32.totalorder %s27, 0
        // Predicated region
        $region37: #{tpu_custom_call.1} parent=27 // pred_check
          %p224 = pneg %p223
        $region38: #{tpu_custom_call.1} parent=27 // pred_check_branch
          %226 = sbr.rel (%p224) target = $region40
        $region39: #{tpu_custom_call.1} parent=27 // pred_region
          %v227 = vlaneseq
          %vm228 = vcmp.ge.s32.totalorder %v227, 0
          %vm229 = vcmp.lt.s32.totalorder %v227, 256
          %vm230 = vmand %vm228, %vm229
          %231 = vst.msk [vmem:[%s220] sm:$0x3] %vm230, 0.0
        $region40: #{tpu_custom_call.1} parent=27 // pred_fallthru
          _
        %v232 = vld [vmem:[%s184] sm:$0xff]
        %v233 = vld [vmem:[%s194] sm:$0x3]
        %235 = vst [vmem:[#allocation1] ss:$2 sm:$0xff] %v232
        %v236 = vld.sshfl [vmem:[#allocation1] sm:$0xff pattern:$0x75316420]
        %v237 = vld.sshfl [vmem:[#allocation1 + $0x8] sm:$0xff pattern:$0x75316420]
        %vm240 = vcmask 1043456
        %v241 = vsel %vm240, %v236, -inf
        %v242 = vrot.slane %v241, 4
        %v243 = vmax.f32 %v241, %v242
        %v244 = vrot.slane %v243, 2
        %v245 = vmax.f32 %v243, %v244
        %v246 = vrot.slane %v245, 1
        %v247 = vmax.f32 %v245, %v246
        %v248 = vsel %vm240, %v237, -inf
        %v249 = vrot.slane %v248, 4
        %v250 = vmax.f32 %v248, %v249
        %v251 = vrot.slane %v250, 2
        %v252 = vmax.f32 %v250, %v251
        %v253 = vrot.slane %v252, 1
        %v254 = vmax.f32 %v252, %v253
        %v257 = vrot.slane %v254, 4
        %v258 = vsel %vm240, %v247, %v257
        %v260 = vsub.f32 %v232, %v258
        %v261 = vmul.f32 %v260, 1.442695
        %v262 = vpow.pop %v261
        %264 = vst [vmem:[#allocation1] ss:$2 sm:$0xff] %v262
        %v265 = vld.sshfl [vmem:[#allocation1] sm:$0xff pattern:$0x75316420]
        %v266 = vld.sshfl [vmem:[#allocation1 + $0x8] sm:$0xff pattern:$0x75316420]
        %v269 = vsel %vm240, %v265, 0.0
        %v270 = vrot.slane %v269, 4
        %v271 = vadd.f32 %v269, %v270
        %v272 = vrot.slane %v271, 2
        %v273 = vadd.f32 %v271, %v272
        %v274 = vrot.slane %v273, 1
        %v275 = vadd.f32 %v273, %v274
        %v276 = vsel %vm240, %v266, 0.0
        %v277 = vrot.slane %v276, 4
        %v278 = vadd.f32 %v276, %v277
        %v279 = vrot.slane %v278, 2
        %v280 = vadd.f32 %v278, %v279
        %v281 = vrot.slane %v280, 1
        %v282 = vadd.f32 %v280, %v281
        %v283 = vlog2.pop %v275
        %v284 = vmul.f32 %v283, 0.6931472
        %v285 = vlog2.pop %v282
        %v286 = vmul.f32 %v285, 0.6931472
        %v287 = vadd.f32 %v247, %v284
        %v288 = vadd.f32 %v254, %v286
        %v289 = vlaneseq
        %v290 = vshrl.u32 %v289, 7
        %v291 = vperm.slane %v233, 0
        %v292 = vperm.slane %v233, 1
        %vm293 = vcmp.eq.s32.totalorder %v290, %v291
        %vm294 = vcmp.eq.s32.totalorder %v290, %v292
        %295 = vst [vmem:[#allocation1] ss:$2 sm:$0xff] %v232
        %v296 = vld.sshfl [vmem:[#allocation1] sm:$0xff pattern:$0x75316420]
        %v297 = vld.sshfl [vmem:[#allocation1 + $0x8] sm:$0xff pattern:$0x75316420]
        %v300 = vsel %vm293, %v296, 0.0
        %v301 = vsel %vm294, %v297, 0.0
        %v302 = vsel %vm240, %v300, 0.0
        %v303 = vrot.slane %v302, 4
        %v304 = vadd.f32 %v302, %v303
        %v305 = vrot.slane %v304, 2
        %v306 = vadd.f32 %v304, %v305
        %v307 = vrot.slane %v306, 1
        %v308 = vadd.f32 %v306, %v307
        %v309 = vsel %vm240, %v301, 0.0
        %v310 = vrot.slane %v309, 4
        %v311 = vadd.f32 %v309, %v310
        %v312 = vrot.slane %v311, 2
        %v313 = vadd.f32 %v311, %v312
        %v314 = vrot.slane %v313, 1
        %v315 = vadd.f32 %v313, %v314
        %v316 = vsub.f32 %v287, %v308
        %v317 = vsub.f32 %v288, %v315
        %v318 = vmax.f32 %v316, 0.0
        %v319 = vmax.f32 %v317, 0.0
        %v320 = vsub.f32 0.0, %v318
        %v321 = vsub.f32 0.0, %v319
        %v322 = vmul.f32 %v320, 1.442695
        %v323 = vpow.pop %v322
        %v324 = vmul.f32 %v321, 1.442695
        %v325 = vpow.pop %v324
        %v326 = vmul.f32 %v318, 0.25
        %v327 = vmul.f32 %v319, 0.25
        %v328 = vsub.f32 1.0, %v323
        %v329 = vsub.f32 1.0, %v325
        %v330 = vmul.f32 %v328, %v328
        %v331 = vmul.f32 %v329, %v329
        %v332 = vmul.f32 %v326, %v330
        %v333 = vmul.f32 %v327, %v331
        %v334 = vld [vmem:[%s220] sm:$0x3]
        %v337 = vrot.slane %v333, 7
        %vm338 = vcmask 1040384
        %v339 = vsel %vm338, %v332, %v337
        %v341 = vadd.f32 %v334, %v339
        %v342 = vlaneseq
        %vm343 = vcmp.ge.s32.totalorder %v342, 0
        %vm344 = vcmp.lt.s32.totalorder %v342, 256
        %vm345 = vmand %vm343, %vm344
        %346 = vst.msk [vmem:[%s220] sm:$0x3] %vm345, %v341
        %s347 = sand.u32 %s98, 1
        %s348 = scalar_lea.sflag [#allocation4], %s347
        %s349 = sand.u32 %s98, 1
        %s350 = smul.addr %s349, 2
        %s351 = scalar_lea.vmem [#allocation7], %s350
        // Predicated region
        $region41: #{tpu_custom_call.1} parent=27 // pred_check
          %p352 = pneg %p108
        $region42: #{tpu_custom_call.1} parent=27 // pred_check_branch
          %354 = sbr.rel (%p352) target = $region44
        $region43: #{tpu_custom_call.1} parent=27 // pred_region
          %356 = vsyncadd %s348, 0
          %s357 = smul.addr %s26, 2
          %s358 = scalar_lea.hbm %s2, %s357
          %s360 = sshll.u32 %s351, 4
          %s361 = int_to_ptr.vmem [resolvable:$true] %s360
          %s362 = sshll.u32 %s358, 4
          %s363 = int_to_ptr.hbm [resolvable:$true] %s362
          %365 = dma.vmem_to_hbm [thread:$0]  %s361, 32, %s363, %s348
        $region44: #{tpu_custom_call.1} parent=27 // pred_fallthru
          _
      $region28: #{tpu_custom_call.1} parent=5 // pred_fallthru
        _
      %p366 = scmp.le.s32.totalorder 2, %s17
      // Predicated region
      $region45: #{tpu_custom_call.1} parent=5 // pred_check
        %p367 = pneg %p366
      $region46: #{tpu_custom_call.1} parent=5 // pred_check_branch
        %369 = sbr.rel (%p367) target = $region48
      $region47: #{tpu_custom_call.1} parent=5 // pred_region
        %s370 = ssub.s32 %s17, 2
        // Predicated region
        $region49: #{tpu_custom_call.1} parent=47 // pred_check
          %p371 = pneg %p114
        $region50: #{tpu_custom_call.1} parent=47 // pred_check_branch
          %373 = sbr.rel (%p371) target = $region52
        $region51: #{tpu_custom_call.1} parent=47 // pred_region
          %s374 = sand.u32 %s99, 1
          %s375 = scalar_lea.sflag [#allocation4], %s374
          %s376 = sand.u32 %s99, 1
          %s377 = smul.addr %s376, 2
          %s378 = scalar_lea.vmem [#allocation7], %s377
          %380 = dma.done %s375, 32
        $region52: #{tpu_custom_call.1} parent=47 // pred_fallthru
          _
      $region48: #{tpu_custom_call.1} parent=5 // pred_fallthru
        _
    $region6: #{tpu_custom_call.1} parent=1 // loop_footer
      %s21 = sadd.s32 1, %s17
    $region7: #{tpu_custom_call.1} parent=1 // loop_footer_branch
      %16 = sbr.rel target = $region3
    $region8: #{tpu_custom_call.1} parent=1 // loop_exit
      _
    %381 = vsyncpa [#allocation3], 1
    %s382 = scalar_lea.sflag [#allocation3], 1
    %383 = vsyncpa %s382, 1
    %384 = vsyncpa [#allocation6], 1
    %s385 = scalar_lea.sflag [#allocation6], 1
    %386 = vsyncpa %s385, 1
    %387 = vsyncpa [#allocation4], 1
    %s388 = scalar_lea.sflag [#allocation4], 1
    %389 = vsyncpa %s388, 1

</llo_original>
